<compile_context>
chip_gen: v7x
topology: tpu7x:2x2x1
jax: 0.10.0
libtpu: 0.0.40
codegen_flags: <defaults>
</compile_context>

<pallas_src>
import jax
import jax.numpy as jnp
import numpy as np
from jax.experimental import pallas as pl
from jax.experimental.pallas import tpu as pltpu


# ----------------------------- Pallas kernel --------------------------------

def _mtd_kernel(bias_ref, x_ref, coef_ref, rx_ref, font_ref, char_ref):
    # bias_ref : SMEM (1,)            -- rx conv bias (scalar)
    # x_ref    : VMEM (1, C, HW_T)    -- one batch element, one HW tile
    # coef_ref : VMEM (1, 3, C)       -- rows: [w_rx, font_emb[b], char_emb[b]]
    # rx_ref / font_ref / char_ref : VMEM (1, 1, HW_T)
    x = x_ref[0]                       # [C, HW_T]
    coef = coef_ref[0]                 # [3, C]
    out = jnp.dot(coef, x, preferred_element_type=jnp.float32)   # [3, HW_T] f32 acc
    rx_ref[0] = (out[0:1] + bias_ref[0]).astype(rx_ref.dtype)
    font_ref[0] = out[1:2].astype(font_ref.dtype)
    char_ref[0] = out[2:3].astype(char_ref.dtype)


# ------------------------------ tiling helpers --------------------------------

def _round_up(x, m):
    return ((x + m - 1) // m) * m


def _choose_hw_tile(hw, c, itemsize, target=8192):
    """Largest multiple-of-128 lane tile that divides round_up(hw,128), capped by
    a ~4 MiB per-buffer VMEM budget and `target` lanes."""
    hw128 = _round_up(hw, 128)
    budget = 4 * 1024 * 1024
    cap = max(128, (budget // max(1, c * itemsize)) // 128 * 128)
    cap = min(cap, target, hw128)
    t = cap
    while t >= 128 and hw128 % t != 0:
        t -= 128
    if t < 128:
        t = 128
    return t, hw128


# ------------------------------- wrapper ---------------------------------------

def multitask_discriminator_fwd(x, font_indices, char_indices, params):
    """x: [B, C, H, W]; indices: [B] int32. Returns [rx, font, char], each [B,1,H,W]."""
    B, C, H, W = x.shape
    HW = H * W
    dtype = x.dtype
    itemsize = jnp.dtype(dtype).itemsize

    x_r = x.reshape(B, C, HW)                                       # native dtype (bf16 ok)
    hw_t, hw_pad = _choose_hw_tile(HW, C, itemsize)
    if hw_pad != HW:
        # Only triggers when HW is not a multiple of 128 (rare for feature maps).
        x_r = jnp.pad(x_r, ((0, 0), (0, 0), (0, hw_pad - HW)))
    n_hw = hw_pad // hw_t

    # embedding lookups + coefficient packing (tiny glue, plain JAX)
    font_e = params["font_emb"][font_indices]                       # [B, C]
    char_e = params["char_emb"][char_indices]                       # [B, C]
    w_rx = jnp.broadcast_to(params["rx_w"][None, :], (B, C))        # [B, C]
    coefs = jnp.stack([w_rx, font_e, char_e], axis=1).astype(dtype) # [B, 3, C]
    bias = params["rx_b"].reshape(1).astype(jnp.float32)            # [1] scalar in SMEM

    out_struct = jax.ShapeDtypeStruct((B, 1, hw_pad), dtype)
    out_spec = pl.BlockSpec((1, 1, hw_t), lambda b, h: (b, 0, h))

    # Advisory cost hint: the kernel is HBM-bound on the x read.
    cost = pl.CostEstimate(
        flops=2 * 3 * C * HW * B,
        transcendentals=0,
        bytes_accessed=(B * C * hw_pad * itemsize          # x read
                        + B * 3 * C * itemsize             # coefs read
                        + 3 * B * hw_pad * itemsize),      # three outputs written
    )

    rx_o, font_o, char_o = pl.pallas_call(
        _mtd_kernel,
        out_shape=(out_struct, out_struct, out_struct),
        grid_spec=pltpu.PrefetchScalarGridSpec(
            num_scalar_prefetch=0,
            grid=(B, n_hw),
            in_specs=[
                pl.BlockSpec(memory_space=pltpu.MemorySpace.SMEM),       # bias
                pl.BlockSpec((1, C, hw_t), lambda b, h: (b, 0, h)),      # x tile
                pl.BlockSpec((1, 3, C), lambda b, h: (b, 0, 0)),         # coefs
            ],
            out_specs=[out_spec, out_spec, out_spec],
        ),
        compiler_params=pltpu.CompilerParams(
            dimension_semantics=("parallel", "parallel"),
        ),
        cost_estimate=cost,
    )(bias, x_r, coefs)

    if hw_pad != HW:
        rx_o, font_o, char_o = (o[:, :, :HW] for o in (rx_o, font_o, char_o))

    rx_out = rx_o.reshape(B, 1, H, W)
    font_out = font_o.reshape(B, 1, H, W)
    char_out = char_o.reshape(B, 1, H, W)
    return [rx_out, font_out, char_out]


# --------------------------- parameter init ----------------------------------

def _xavier_uniform(key, shape, gain):
    # matches nn.init.xavier_uniform_ for 2D (fan_in=shape[1], fan_out=shape[0])
    fan_in, fan_out = shape[1], shape[0]
    a = gain * np.sqrt(6.0 / (fan_in + fan_out))
    return jax.random.uniform(key, shape, jnp.float32, minval=-a, maxval=a)


def _spectral_normalize(w2d):
    # spectral_norm() divides the weight by its largest singular value.
    # (PyTorch estimates it via power iteration; we use the exact value.)
    sigma = jnp.linalg.norm(w2d, ord=2)
    return w2d / sigma


def make_params(key, C, n_fonts, n_chars):
    k1, k2, k3 = jax.random.split(key, 3)
    gain = 2.0 ** 0.5
    font_emb = _spectral_normalize(_xavier_uniform(k1, (n_fonts, C), gain))
    char_emb = _spectral_normalize(_xavier_uniform(k2, (n_chars, C), gain))
    # Conv2d(C, 1, kernel_size=1) weight [1, C, 1, 1] -> flat [C]
    rx_w2d = _spectral_normalize(_xavier_uniform(k3, (1, C), gain))
    return {
        "font_emb": font_emb,
        "char_emb": char_emb,
        "rx_w": rx_w2d.reshape(C),
        "rx_b": jnp.zeros((1,), jnp.float32),
    }


# --------------------------------- main ---------------------------------------

if __name__ == "__main__":
    B, C, H, W = 2, 4, 16, 16
    n_fonts, n_chars = 10, 20

    key = jax.random.PRNGKey(0)
    kx, kf, kc, kp = jax.random.split(key, 4)

    x = jax.random.normal(kx, (B, C, H, W), jnp.float32)
    font_indices = jax.random.randint(kf, (B,), 0, n_fonts, jnp.int32)
    char_indices = jax.random.randint(kc, (B,), 0, n_chars, jnp.int32)
    params = make_params(kp, C, n_fonts, n_chars)

    rx, font_out, char_out = multitask_discriminator_fwd(
        x, font_indices, char_indices, params
    )
    jax.block_until_ready((rx, font_out, char_out))

    # reference check (plain JAX)
    rx_ref = (
        jnp.einsum("bchw,c->bhw", x, params["rx_w"]) + params["rx_b"][0]
    )[:, None]
    font_ref = jnp.einsum("bchw,bc->bhw", x, params["font_emb"][font_indices])[:, None]
    char_ref = jnp.einsum("bchw,bc->bhw", x, params["char_emb"][char_indices])[:, None]
    np.testing.assert_allclose(np.asarray(rx), np.asarray(rx_ref), rtol=1e-5, atol=1e-5)
    np.testing.assert_allclose(np.asarray(font_out), np.asarray(font_ref), rtol=1e-5, atol=1e-5)
    np.testing.assert_allclose(np.asarray(char_out), np.asarray(char_ref), rtol=1e-5, atol=1e-5)

    print("KERNEL_OK")
</pallas_src>

<mosaic_0001>
module attributes {stable_mosaic.version = 11 : i64} {
  func.func @_mtd_kernel(%arg0: i32, %arg1: i32, %arg2: memref<1xf32, #tpu.memory_space<smem>>, %arg3: memref<1x4x256xf32, #tpu.memory_space<vmem>>, %arg4: memref<1x3x4xf32, #tpu.memory_space<vmem>>, %arg5: memref<1x1x256xf32, #tpu.memory_space<vmem>>, %arg6: memref<1x1x256xf32, #tpu.memory_space<vmem>>, %arg7: memref<1x1x256xf32, #tpu.memory_space<vmem>>) attributes {dimension_semantics = [#tpu.dimension_semantics<parallel>, #tpu.dimension_semantics<parallel>], iteration_bounds = array<i64: 2, 1>, scalar_prefetch = 0 : i64, scratch_operands = 0 : i64, tpu.core_type = #tpu.core_type<tc>, window_params = [{transform_indices = @transform_0, window_bounds = array<i64: 1>}, {transform_indices = @transform_1, window_bounds = array<i64: 1, 4, 256>}, {transform_indices = @transform_2, window_bounds = array<i64: 1, 3, 4>}, {transform_indices = @transform_3, window_bounds = array<i64: 1, 1, 256>}, {transform_indices = @transform_4, window_bounds = array<i64: 1, 1, 256>}, {transform_indices = @transform_5, window_bounds = array<i64: 1, 1, 256>}]} {
    %c0 = arith.constant 0 : index
    %c0_0 = arith.constant 0 : index
    %c0_1 = arith.constant 0 : index
    %0 = vector.load %arg3[%c0, %c0_0, %c0_1] : memref<1x4x256xf32, #tpu.memory_space<vmem>>, vector<1x4x256xf32>
    %1 = vector.shape_cast %0 : vector<1x4x256xf32> to vector<4x256xf32>
    %c0_2 = arith.constant 0 : index
    %c0_3 = arith.constant 0 : index
    %c0_4 = arith.constant 0 : index
    %2 = vector.load %arg4[%c0_2, %c0_3, %c0_4] : memref<1x3x4xf32, #tpu.memory_space<vmem>>, vector<1x3x4xf32>
    %3 = vector.shape_cast %2 : vector<1x3x4xf32> to vector<3x4xf32>
    %cst = arith.constant dense<0.000000e+00> : vector<3x256xf32>
    %4 = tpu.matmul %3, %1, %cst {dimension_numbers = #tpu.dot_dimension_numbers<[1], [0], [0], [1], [0, 0, 1, 1], [], []>} : vector<3x4xf32>, vector<4x256xf32>, vector<3x256xf32> -> vector<3x256xf32>
    %5 = vector.extract_strided_slice %4 {offsets = [0, 0], sizes = [1, 256], strides = [1, 1]} : vector<3x256xf32> to vector<1x256xf32>
    %c0_5 = arith.constant 0 : index
    %6 = memref.load %arg2[%c0_5] : memref<1xf32, #tpu.memory_space<smem>>
    %7 = vector.broadcast %6 : f32 to vector<1x256xf32>
    %8 = arith.addf %5, %7 : vector<1x256xf32>
    %c0_6 = arith.constant 0 : index
    %c0_7 = arith.constant 0 : index
    %c0_8 = arith.constant 0 : index
    %9 = vector.load %arg5[%c0_6, %c0_7, %c0_8] : memref<1x1x256xf32, #tpu.memory_space<vmem>>, vector<1x1x256xf32>
    %10 = vector.shape_cast %9 : vector<1x1x256xf32> to vector<1x256xf32>
    %11 = vector.shape_cast %8 : vector<1x256xf32> to vector<1x1x256xf32>
    tpu.vector_store %arg5[%c0_6, %c0_7, %c0_8], %11 {strides = array<i32>} : memref<1x1x256xf32, #tpu.memory_space<vmem>>, vector<1x1x256xf32>,
    %12 = vector.extract_strided_slice %4 {offsets = [1, 0], sizes = [1, 256], strides = [1, 1]} : vector<3x256xf32> to vector<1x256xf32>
    %c0_9 = arith.constant 0 : index
    %c0_10 = arith.constant 0 : index
    %c0_11 = arith.constant 0 : index
    %13 = vector.load %arg6[%c0_9, %c0_10, %c0_11] : memref<1x1x256xf32, #tpu.memory_space<vmem>>, vector<1x1x256xf32>
    %14 = vector.shape_cast %13 : vector<1x1x256xf32> to vector<1x256xf32>
    %15 = vector.shape_cast %12 : vector<1x256xf32> to vector<1x1x256xf32>
    tpu.vector_store %arg6[%c0_9, %c0_10, %c0_11], %15 {strides = array<i32>} : memref<1x1x256xf32, #tpu.memory_space<vmem>>, vector<1x1x256xf32>,
    %16 = vector.extract_strided_slice %4 {offsets = [2, 0], sizes = [1, 256], strides = [1, 1]} : vector<3x256xf32> to vector<1x256xf32>
    %c0_12 = arith.constant 0 : index
    %c0_13 = arith.constant 0 : index
    %c0_14 = arith.constant 0 : index
    %17 = vector.load %arg7[%c0_12, %c0_13, %c0_14] : memref<1x1x256xf32, #tpu.memory_space<vmem>>, vector<1x1x256xf32>
    %18 = vector.shape_cast %17 : vector<1x1x256xf32> to vector<1x256xf32>
    %19 = vector.shape_cast %16 : vector<1x256xf32> to vector<1x1x256xf32>
    tpu.vector_store %arg7[%c0_12, %c0_13, %c0_14], %19 {strides = array<i32>} : memref<1x1x256xf32, #tpu.memory_space<vmem>>, vector<1x1x256xf32>,
    return
  }
  func.func @transform_0(%arg0: i32, %arg1: i32) -> i32 {
    %c0_i32 = arith.constant 0 : i32
    %c0_i32_0 = arith.constant 0 : i32
    return %c0_i32 : i32
  }
  func.func @transform_1(%arg0: i32, %arg1: i32) -> (i32, i32, i32) {
    %c0_i32 = arith.constant 0 : i32
    %c0_i32_0 = arith.constant 0 : i32
    return %arg0, %c0_i32, %arg1 : i32, i32, i32
  }
  func.func @transform_2(%arg0: i32, %arg1: i32) -> (i32, i32, i32) {
    %c0_i32 = arith.constant 0 : i32
    %c0_i32_0 = arith.constant 0 : i32
    %c0_i32_1 = arith.constant 0 : i32
    return %arg0, %c0_i32, %c0_i32_0 : i32, i32, i32
  }
  func.func @transform_3(%arg0: i32, %arg1: i32) -> (i32, i32, i32) {
    %c0_i32 = arith.constant 0 : i32
    %c0_i32_0 = arith.constant 0 : i32
    return %arg0, %c0_i32, %arg1 : i32, i32, i32
  }
  func.func @transform_4(%arg0: i32, %arg1: i32) -> (i32, i32, i32) {
    %c0_i32 = arith.constant 0 : i32
    %c0_i32_0 = arith.constant 0 : i32
    return %arg0, %c0_i32, %arg1 : i32, i32, i32
  }
  func.func @transform_5(%arg0: i32, %arg1: i32) -> (i32, i32, i32) {
    %c0_i32 = arith.constant 0 : i32
    %c0_i32_0 = arith.constant 0 : i32
    return %arg0, %c0_i32, %arg1 : i32, i32, i32
  }
}

</mosaic_0001>

<llo_original>
// kernel: tpu_custom_call.1
$region0: #{tpu_custom_call.1}
  #allocation0 [shape = 'u32[]', space=smem, size = 0x4, offset = 0x4, fixed_abs, tag = 'smem constant byte address 0x4 - core index']
  #allocation1 [shape = 'u32[144,128]{1,0:T(1,128)}', space=vmem, size = 0x12000, scoped, tag = 'internal scratch']
  #allocation2 [shape = 'f32[1]{0:T(128)S(6)}', space=smem, size = 0x200, scoped, tag = 'scoped memory for tpu_custom_call.1']
  %s0 = inlined_call_operand.<no memory space> [shape: f32[1], index: 0, kind: input, shape index: {}]
  %s1 = inlined_call_operand.vmem [shape: f32[2,4,256], index: 1, kind: input, shape index: {}]
  %s2 = inlined_call_operand.vmem [shape: f32[2,3,4], index: 2, kind: input, shape index: {}]
  %s3 = inlined_call_operand.hbm [shape: f32[2,1,256], index: 3, kind: output, shape index: {0}]
  %s4 = inlined_call_operand.hbm [shape: f32[2,1,256], index: 4, kind: output, shape index: {1}]
  %s5 = inlined_call_operand.hbm [shape: f32[2,1,256], index: 5, kind: output, shape index: {2}]
  %6 = xla_tuple %s3, %s4, %s5
  %s7 = sld [smem:[#allocation0]]
  $region61: #{tpu_custom_call.1} parent=0
    _
  %s9 = ssub.s32 1, %s7
  %s10 = scalar_select 0, %s9, %s7
  %11 = sst [smem:[#allocation2]] %s0
  $region1: #{tpu_custom_call.1} parent=0
    #allocation3 [shape = 'u8[2048]{0}', space=vmem, size = 0x800, scoped, tag = 'output window, operand 0']
    #allocation4 [shape = 's32[2]{0}', space=sflag, size = 0x8, scoped, tag = 'scoped memory for tpu_custom_call.1']
    #allocation5 [shape = 'u8[2048]{0}', space=vmem, size = 0x800, scoped, tag = 'output window, operand 1']
    #allocation6 [shape = 's32[2]{0}', space=sflag, size = 0x8, scoped, tag = 'scoped memory for tpu_custom_call.1']
    #allocation7 [shape = 'u8[2048]{0}', space=vmem, size = 0x800, scoped, tag = 'output window, operand 2']
    %12 = vsyncpa [#allocation4], 0
    %s13 = scalar_lea.sflag [#allocation4], 1
    %14 = vsyncpa %s13, 0
    %15 = vsyncpa [#allocation6], 0
    %s16 = scalar_lea.sflag [#allocation6], 1
    %17 = vsyncpa %s16, 0
    loop: start=0, step=1, limit=4
    $region2: #{tpu_custom_call.1} parent=1 // loop_pre_header
      _
    $region3: #{tpu_custom_call.1} parent=1 // loop_header
      %s19 = sphi 0, %s23
      %p20 = scmp.ge.s32.totalorder %s19, 4
      %s26 = sphi 0, %s38
      %s27 = sphi 0, %s34
      %s28 = sphi 0, %s26
      %s29 = sphi 0, %s27
      %s30 = sphi 0, %s28
      %s31 = sphi 0, %s29
      %s39 = sphi 0, %s39
      %s41 = sphi 0, %s39
      %s42 = sphi 0, %s41
      %s56 = sphi 0, %s42
      %s64 = sphi 0, %s66
      %s67 = sphi 0, %s64
      %s68 = sphi 0, %s67
      %s84 = sphi 0, %s68
      %s90 = sphi 0, %s92
      %s93 = sphi 0, %s90
      %s94 = sphi 0, %s93
      %s110 = sphi 0, %s94
      %s118 = sphi 0, %s120
      %s121 = sphi 0, %s118
      %s122 = sphi 0, %s121
      %s138 = sphi 0, %s122
      %s146 = sphi 0, %s148
      %s149 = sphi 0, %s146
      %s150 = sphi 0, %s149
      %s166 = sphi 0, %s150
      %s174 = sphi 0, %s176
      %s177 = sphi 0, %s174
      %s178 = sphi 0, %s177
      %s194 = sphi 0, %s178
    $region4: #{tpu_custom_call.1} parent=1 // loop_header_branch
      %22 = sbr.rel (%p20) target = $region8
    $region5: #{tpu_custom_call.1} parent=1 // loop_body
      %s24 = ssub.s32 %s19, 1
      %s25 = ssub.s32 %s19, 2
      %s32 = sadd.s32 1, %s27
      %p33 = scmp.ge.s32.totalorder %s32, 1
      %s34 = scalar_select %p33, 0, %s32
      %s35 = sadd.s32 1, %s26
      %s36 = scalar_select %p33, %s35, %s26
      %p37 = scmp.ge.s32.totalorder %s36, 2
      %s38 = scalar_select %p37, 0, %s36
      %s40 = sadd.s32 %s39, 1
      %p43 = scmp.eq.s32.totalorder %s19, 1
      %p44 = scmp.ne.s32.totalorder %s39, %s41
      %p45 = scmp.eq.s32.totalorder %s19, 0
      %p46 = por %p44, %p45
      %p47 = scmp.ne.s32.totalorder %s39, %s41
      %p48 = scmp.eq.s32.totalorder %s24, 1
      %p49 = por %p47, %p48
      %p50 = scmp.ne.s32.totalorder %s41, %s42
      %p51 = scmp.eq.s32.totalorder %s24, 0
      %p52 = por %p50, %p51
      %p53 = scmp.ne.s32.totalorder %s41, %s42
      %p54 = scmp.eq.s32.totalorder %s25, 1
      %p55 = por %p53, %p54
      %p57 = scmp.ne.s32.totalorder %s42, %s56
      %p58 = scmp.eq.s32.totalorder %s25, 0
      %p59 = por %p57, %p58
      %s60 = ssub.s32 %s26, %s38
      %s61 = ssub.s32 %s27, %s34
      %s62 = sor.u32 %s60, %s61
      %p63 = scmp.eq.s32.totalorder %s62, 0
      %s65 = sadd.s32 %s64, 1
      %s66 = scalar_select %p63, %s64, %s65
      %p69 = pneg %p63
      %p70 = scmp.eq.s32.totalorder %s19, 1
      %p71 = por %p69, %p70
      %p72 = scmp.ne.s32.totalorder %s64, %s67
      %p73 = scmp.eq.s32.totalorder %s19, 0
      %p74 = por %p72, %p73
      %p75 = scmp.ne.s32.totalorder %s64, %s67
      %p76 = scmp.eq.s32.totalorder %s24, 1
      %p77 = por %p75, %p76
      %p78 = scmp.ne.s32.totalorder %s67, %s68
      %p79 = scmp.eq.s32.totalorder %s24, 0
      %p80 = por %p78, %p79
      %p81 = scmp.ne.s32.totalorder %s67, %s68
      %p82 = scmp.eq.s32.totalorder %s25, 1
      %p83 = por %p81, %p82
      %p85 = scmp.ne.s32.totalorder %s68, %s84
      %p86 = scmp.eq.s32.totalorder %s25, 0
      %p87 = por %p85, %p86
      %s88 = ssub.s32 %s26, %s38
      %p89 = scmp.eq.s32.totalorder %s88, 0
      %s91 = sadd.s32 %s90, 1
      %s92 = scalar_select %p89, %s90, %s91
      %p95 = pneg %p89
      %p96 = scmp.eq.s32.totalorder %s19, 1
      %p97 = por %p95, %p96
      %p98 = scmp.ne.s32.totalorder %s90, %s93
      %p99 = scmp.eq.s32.totalorder %s19, 0
      %p100 = por %p98, %p99
      %p101 = scmp.ne.s32.totalorder %s90, %s93
      %p102 = scmp.eq.s32.totalorder %s24, 1
      %p103 = por %p101, %p102
      %p104 = scmp.ne.s32.totalorder %s93, %s94
      %p105 = scmp.eq.s32.totalorder %s24, 0
      %p106 = por %p104, %p105
      %p107 = scmp.ne.s32.totalorder %s93, %s94
      %p108 = scmp.eq.s32.totalorder %s25, 1
      %p109 = por %p107, %p108
      %p111 = scmp.ne.s32.totalorder %s94, %s110
      %p112 = scmp.eq.s32.totalorder %s25, 0
      %p113 = por %p111, %p112
      %s114 = ssub.s32 %s26, %s38
      %s115 = ssub.s32 %s27, %s34
      %s116 = sor.u32 %s114, %s115
      %p117 = scmp.eq.s32.totalorder %s116, 0
      %s119 = sadd.s32 %s118, 1
      %s120 = scalar_select %p117, %s118, %s119
      %p123 = pneg %p117
      %p124 = scmp.eq.s32.totalorder %s19, 1
      %p125 = por %p123, %p124
      %p126 = scmp.ne.s32.totalorder %s118, %s121
      %p127 = scmp.eq.s32.totalorder %s19, 0
      %p128 = por %p126, %p127
      %p129 = scmp.ne.s32.totalorder %s118, %s121
      %p130 = scmp.eq.s32.totalorder %s24, 1
      %p131 = por %p129, %p130
      %p132 = scmp.ne.s32.totalorder %s121, %s122
      %p133 = scmp.eq.s32.totalorder %s24, 0
      %p134 = por %p132, %p133
      %p135 = scmp.ne.s32.totalorder %s121, %s122
      %p136 = scmp.eq.s32.totalorder %s25, 1
      %p137 = por %p135, %p136
      %p139 = scmp.ne.s32.totalorder %s122, %s138
      %p140 = scmp.eq.s32.totalorder %s25, 0
      %p141 = por %p139, %p140
      %s142 = ssub.s32 %s26, %s38
      %s143 = ssub.s32 %s27, %s34
      %s144 = sor.u32 %s142, %s143
      %p145 = scmp.eq.s32.totalorder %s144, 0
      %s147 = sadd.s32 %s146, 1
      %s148 = scalar_select %p145, %s146, %s147
      %p151 = pneg %p145
      %p152 = scmp.eq.s32.totalorder %s19, 1
      %p153 = por %p151, %p152
      %p154 = scmp.ne.s32.totalorder %s146, %s149
      %p155 = scmp.eq.s32.totalorder %s19, 0
      %p156 = por %p154, %p155
      %p157 = scmp.ne.s32.totalorder %s146, %s149
      %p158 = scmp.eq.s32.totalorder %s24, 1
      %p159 = por %p157, %p158
      %p160 = scmp.ne.s32.totalorder %s149, %s150
      %p161 = scmp.eq.s32.totalorder %s24, 0
      %p162 = por %p160, %p161
      %p163 = scmp.ne.s32.totalorder %s149, %s150
      %p164 = scmp.eq.s32.totalorder %s25, 1
      %p165 = por %p163, %p164
      %p167 = scmp.ne.s32.totalorder %s150, %s166
      %p168 = scmp.eq.s32.totalorder %s25, 0
      %p169 = por %p167, %p168
      %s170 = ssub.s32 %s26, %s38
      %s171 = ssub.s32 %s27, %s34
      %s172 = sor.u32 %s170, %s171
      %p173 = scmp.eq.s32.totalorder %s172, 0
      %s175 = sadd.s32 %s174, 1
      %s176 = scalar_select %p173, %s174, %s175
      %p179 = pneg %p173
      %p180 = scmp.eq.s32.totalorder %s19, 1
      %p181 = por %p179, %p180
      %p182 = scmp.ne.s32.totalorder %s174, %s177
      %p183 = scmp.eq.s32.totalorder %s19, 0
      %p184 = por %p182, %p183
      %p185 = scmp.ne.s32.totalorder %s174, %s177
      %p186 = scmp.eq.s32.totalorder %s24, 1
      %p187 = por %p185, %p186
      %p188 = scmp.ne.s32.totalorder %s177, %s178
      %p189 = scmp.eq.s32.totalorder %s24, 0
      %p190 = por %p188, %p189
      %p191 = scmp.ne.s32.totalorder %s177, %s178
      %p192 = scmp.eq.s32.totalorder %s25, 1
      %p193 = por %p191, %p192
      %p195 = scmp.ne.s32.totalorder %s178, %s194
      %p196 = scmp.eq.s32.totalorder %s25, 0
      %p197 = por %p195, %p196
      %p198 = scmp.le.s32.totalorder 1, %s19
      %p199 = scmp.lt.s32.totalorder %s19, 3
      %p200 = pnand %p198, %p199
      %p201 = pneg %p200
      // Predicated region
      $region9: #{tpu_custom_call.1} parent=5 // pred_check
        _
      $region10: #{tpu_custom_call.1} parent=5 // pred_check_branch
        %203 = sbr.rel (%p200) target = $region12
      $region11: #{tpu_custom_call.1} parent=5 // pred_region
        %s204 = ssub.s32 %s19, 1
        // Predicated region
        $region13: #{tpu_custom_call.1} parent=11 // pred_check
          %p205 = pneg %p52
        $region14: #{tpu_custom_call.1} parent=11 // pred_check_branch
          %207 = sbr.rel (%p205) target = $region16
        $region15: #{tpu_custom_call.1} parent=11 // pred_region
          _
        $region16: #{tpu_custom_call.1} parent=11 // pred_fallthru
          _
      $region12: #{tpu_custom_call.1} parent=5 // pred_fallthru
        _
      %p208 = scmp.lt.s32.totalorder %s19, 2
      // Predicated region
      $region17: #{tpu_custom_call.1} parent=5 // pred_check
        %p209 = pneg %p208
      $region18: #{tpu_custom_call.1} parent=5 // pred_check_branch
        %211 = sbr.rel (%p209) target = $region20
      $region19: #{tpu_custom_call.1} parent=5 // pred_region
        // Predicated region
        $region21: #{tpu_custom_call.1} parent=19 // pred_check
          %p212 = pneg %p74
        $region22: #{tpu_custom_call.1} parent=19 // pred_check_branch
          %214 = sbr.rel (%p212) target = $region24
        $region23: #{tpu_custom_call.1} parent=19 // pred_region
          %s215 = smul.u32 2, %s27
          %p216 = scmp.lt.s32.totalorder %s26, 1
          %s217 = scalar_select %p216, %s26, 1
          %p218 = scmp.lt.s32.totalorder %s215, 1
          %s219 = scalar_select %p218, %s215, 1
          %s220 = smul.addr %s217, 2
          %s221 = sadd.s32 %s219, %s220
          %s222 = smul.addr %s221, 4
          %s223 = scalar_lea.vmem %s1, %s222
          %s224 = smul.u32 2, %s27
        $region24: #{tpu_custom_call.1} parent=19 // pred_fallthru
          _
        // Predicated region
        $region25: #{tpu_custom_call.1} parent=19 // pred_check
          %p225 = pneg %p100
        $region26: #{tpu_custom_call.1} parent=19 // pred_check_branch
          %227 = sbr.rel (%p225) target = $region28
        $region27: #{tpu_custom_call.1} parent=19 // pred_region
          %p228 = scmp.lt.s32.totalorder %s26, 1
          %s229 = scalar_select %p228, %s26, 1
          %s230 = smul.addr %s229, 4
          %s231 = scalar_lea.vmem %s2, %s230
        $region28: #{tpu_custom_call.1} parent=19 // pred_fallthru
          _
      $region20: #{tpu_custom_call.1} parent=5 // pred_fallthru
        _
      %p232 = scmp.le.s32.totalorder 1, %s19
      %p233 = scmp.lt.s32.totalorder %s19, 3
      %p234 = pnand %p232, %p233
      %p235 = pneg %p234
      // Predicated region
      $region29: #{tpu_custom_call.1} parent=5 // pred_check
        _
      $region30: #{tpu_custom_call.1} parent=5 // pred_check_branch
        %237 = sbr.rel (%p234) target = $region32
      $region31: #{tpu_custom_call.1} parent=5 // pred_region
        %s238 = ssub.s32 %s19, 1
        %p239 = pneg %p52
        %p240 = pneg %p49
        %s241 = smul.u32 2, %s29
        %p242 = scmp.lt.s32.totalorder %s28, 1
        %s243 = scalar_select %p242, %s28, 1
        %p244 = scmp.lt.s32.totalorder %s241, 1
        %s245 = scalar_select %p244, %s241, 1
        %s246 = smul.addr %s243, 2
        %s247 = sadd.s32 %s245, %s246
        %s248 = smul.addr %s247, 4
        %s249 = scalar_lea.vmem %s1, %s248
        %p250 = pneg %p80
        %p251 = pneg %p77
        %p252 = scmp.lt.s32.totalorder %s28, 1
        %s253 = scalar_select %p252, %s28, 1
        %s254 = smul.addr %s253, 4
        %s255 = scalar_lea.vmem %s2, %s254
        %p256 = pneg %p106
        %p257 = pneg %p103
        %p258 = pneg %p134
        %p259 = pneg %p131
        %s260 = sand.u32 %s121, 1
        %s261 = scalar_lea.sflag [#allocation4], %s260
        %s262 = sand.u32 %s121, 1
        %s263 = smul.addr %s262, 2
        %s264 = scalar_lea.vmem [#allocation3], %s263
        %p265 = pneg %p162
        %p266 = pneg %p159
        %s267 = sand.u32 %s24, 1
        %s268 = scalar_lea.sflag [#allocation6], %s267
        %s269 = sand.u32 %s149, 1
        %s270 = smul.addr %s269, 2
        %s271 = scalar_lea.vmem [#allocation5], %s270
        %p272 = pneg %p190
        %p273 = pneg %p187
        %s274 = sand.u32 %s24, 1
        %s275 = scalar_lea.sflag [#allocation6], %s274
        %s276 = sand.u32 %s177, 1
        %s277 = smul.addr %s276, 2
        %s278 = scalar_lea.vmem [#allocation7], %s277
        %s279 = smul.u32 2, %s29
        %p280 = scmp.lt.s32.totalorder %s28, 1
        %s281 = scalar_select %p280, %s28, 1
        %p282 = scmp.lt.s32.totalorder %s279, 1
        %s283 = scalar_select %p282, %s279, 1
        %s284 = smul.addr %s281, 2
        %s285 = sadd.s32 %s283, %s284
        %s286 = smul.addr %s285, 4
        %s287 = scalar_lea.vmem %s1, %s286
        %s288 = smul.u32 2, %s29
        %p289 = scmp.lt.s32.totalorder %s28, 1
        %s290 = scalar_select %p289, %s28, 1
        %s291 = smul.addr %s290, 4
        %s292 = scalar_lea.vmem %s2, %s291
        %s293 = smul.u32 2, %s29
        %s294 = smul.u32 2, %s29
        %s295 = smul.u32 2, %s29
        %v296 = vld [vmem:[%s287] sm:$0xff]
        %v297 = vld [vmem:[%s292] sm:$0x7]
        %v299 = vcombine.high %v296, %v296
        %vm300 = vcmask 31744
        %v302 = vsel %vm300, %v297, 0
        %vm304 = vcmask 1043456
        %v305 = vsel %vm304, %v296, 0
        %v307 = vsel %vm304, %v299, 0
        %309 = vmatprep.subr.mxu0 %v307
        %310 = vmatpush1.msra.mxu0 %v305
        %311 = vmatprep.subr.mxu0 0.0
        %312 = vmatpush1.msra.mxu0 0.0
        %313 = vmatprep.subr.mxu0 0.0
        %314 = vmatpush1.msra.mxu0 0.0
        %315 = vmatprep.subr.mxu0 0.0
        %316 = vmatpush1.msra.mxu0 0.0
        %317 = vmatprep.subr.mxu0 0.0
        %318 = vmatpush1.msra.mxu0 0.0
        %319 = vmatprep.subr.mxu0 0.0
        %320 = vmatpush1.msra.mxu0 0.0
        %321 = vmatprep.subr.mxu0 0.0
        %322 = vmatpush1.msra.mxu0 0.0
        %323 = vmatprep.subr.mxu0 0.0
        %324 = vmatpush1.msra.mxu0 0.0
        %325 = vmatprep.subr.mxu0 0.0
        %326 = vmatpush1.msra.mxu0 0.0
        %327 = vmatprep.subr.mxu0 0.0
        %328 = vmatpush1.msra.mxu0 0.0
        %329 = vmatprep.subr.mxu0 0.0
        %330 = vmatpush1.msra.mxu0 0.0
        %331 = vmatprep.subr.mxu0 0.0
        %332 = vmatpush1.msra.mxu0 0.0
        %333 = vmatprep.subr.mxu0 0.0
        %334 = vmatpush1.msra.mxu0 0.0
        %335 = vmatprep.subr.mxu0 0.0
        %336 = vmatpush1.msra.mxu0 0.0
        %337 = vmatprep.subr.mxu0 0.0
        %338 = vmatpush1.msra.mxu0 0.0
        %339 = vmatprep.subr.mxu0 0.0
        %340 = vmatpush1.msra.mxu0 0.0
        %341 = vmatprep.subr.mxu0 0.0
        %342 = vmatpush1.msra.mxu0 0.0
        %343 = vmatprep.subr.mxu0 0.0
        %344 = vmatpush1.msra.mxu0 0.0
        %345 = vmatprep.subr.mxu0 0.0
        %346 = vmatpush1.msra.mxu0 0.0
        %347 = vmatprep.subr.mxu0 0.0
        %348 = vmatpush1.msra.mxu0 0.0
        %349 = vmatprep.subr.mxu0 0.0
        %350 = vmatpush1.msra.mxu0 0.0
        %351 = vmatprep.subr.mxu0 0.0
        %352 = vmatpush1.msra.mxu0 0.0
        %353 = vmatprep.subr.mxu0 0.0
        %354 = vmatpush1.msra.mxu0 0.0
        %355 = vmatprep.subr.mxu0 0.0
        %356 = vmatpush1.msra.mxu0 0.0
        %357 = vmatprep.subr.mxu0 0.0
        %358 = vmatpush1.msra.mxu0 0.0
        %359 = vmatprep.subr.mxu0 0.0
        %360 = vmatpush1.msra.mxu0 0.0
        %361 = vmatprep.subr.mxu0 0.0
        %362 = vmatpush1.msra.mxu0 0.0
        %363 = vmatprep.subr.mxu0 0.0
        %364 = vmatpush1.msra.mxu0 0.0
        %365 = vmatprep.subr.mxu0 0.0
        %366 = vmatpush1.msra.mxu0 0.0
        %367 = vmatprep.subr.mxu0 0.0
        %368 = vmatpush1.msra.mxu0 0.0
        %369 = vmatprep.subr.mxu0 0.0
        %370 = vmatpush1.msra.mxu0 0.0
        %371 = vmatprep.subr.mxu0 0.0
        %372 = vmatpush1.msra.mxu0 0.0
        %373 = vmatprep.mubr.f32.mxu0 0.0
        %374 = vmatmul.mubr.f32.gmra.mrb[0].mxu0 %v302
        %v375 = vpop.f32.mrb[0].mxu0
        %v376 = vadd.f32 0.0, %v375
        %v377 = vpop.f32.mrb[0].mxu0
        %v378 = vadd.f32 0.0, %v377
        %379 = vdwg.mxu0
        %s380 = sld [smem:[#allocation2]]
        %v381 = vstv %s380
        %v382 = vadd.f32 %v376, %v381
        %v383 = vadd.f32 %v378, %v381
        %v386 = vcombine.low %v382, %v383
        %v388 = vunpack.c.l.s4 1966171168
        %v389 = vunpack.c.0.s8 %v388
        %v390 = vlaneseq
        %v391 = vshrl.u32 %v390, 7
        %v392 = vsub.s32 %v389, %v391
        %v393 = vrot.slane %v386, %v392
        %v395 = vunpack.c.l.s4 1966171168
        %v396 = vunpack.c.0.s8 %v395
        %v397 = vlaneseq
        %v398 = vshrl.u32 %v397, 7
        %v399 = vsub.s32 %v396, %v398
        %v400 = vrot.slane %v393, %v399
        %v402 = vlaneseq
        %vm403 = vcmp.ge.s32.totalorder %v402, 0
        %vm404 = vcmp.lt.s32.totalorder %v402, 256
        %vm405 = vmand %vm403, %vm404
        %406 = vst.msk [vmem:[%s264] sm:$0x3] %vm405, %v400
        %v409 = vcombine.low %v376, %v378
        %v411 = vunpack.c.l.s4 1966171168
        %v412 = vunpack.c.0.s8 %v411
        %v413 = vlaneseq
        %v414 = vshrl.u32 %v413, 7
        %v415 = vsub.s32 %v412, %v414
        %v416 = vrot.slane %v409, %v415
        %v417 = vcombine.high %v416, %v416
        %v419 = vunpack.c.l.s4 1966171168
        %v420 = vunpack.c.0.s8 %v419
        %v421 = vlaneseq
        %v422 = vshrl.u32 %v421, 7
        %v423 = vsub.s32 %v420, %v422
        %v424 = vrot.slane %v417, %v423
        %426 = vst.msk [vmem:[%s271] sm:$0x3] %vm405, %v424
        %v428 = vunpack.c.l.s4 1966171168
        %v429 = vunpack.c.0.s8 %v428
        %v430 = vlaneseq
        %v431 = vshrl.u32 %v430, 7
        %v432 = vsub.s32 %v429, %v431
        %v433 = vrot.slane %v416, %v432
        %v434 = vcombine.high %v433, %v433
        %436 = vst.msk [vmem:[%s278] sm:$0x3] %vm405, %v434
        %s437 = sand.u32 %s121, 1
        %s438 = scalar_lea.sflag [#allocation4], %s437
        %s439 = sand.u32 %s121, 1
        %s440 = smul.addr %s439, 2
        %s441 = scalar_lea.vmem [#allocation3], %s440
        %s442 = sand.u32 %s24, 1
        %s443 = scalar_lea.sflag [#allocation6], %s442
        %s444 = sand.u32 %s149, 1
        %s445 = smul.addr %s444, 2
        %s446 = scalar_lea.vmem [#allocation5], %s445
        %s447 = sand.u32 %s24, 1
        %s448 = scalar_lea.sflag [#allocation6], %s447
        %s449 = sand.u32 %s177, 1
        %s450 = smul.addr %s449, 2
        %s451 = scalar_lea.vmem [#allocation7], %s450
        // Predicated region
        $region33: #{tpu_custom_call.1} parent=31 // pred_check
          %p452 = pneg %p131
        $region34: #{tpu_custom_call.1} parent=31 // pred_check_branch
          %454 = sbr.rel (%p452) target = $region36
        $region35: #{tpu_custom_call.1} parent=31 // pred_region
          %s455 = smul.u32 2, %s29
          %s457 = ssub.s32 32, 32
          %458 = vsyncadd %s438, %s457
          %s459 = smul.addr %s28, 2
          %s460 = sadd.s32 %s455, %s459
          %s461 = smul.addr %s460, 16
          %s462 = scalar_lea.hbm %s3, %s461
          %s464 = sshll.u32 %s441, 4
          %s465 = int_to_ptr.vmem [resolvable:$true] %s464
          %467 = dma.vmem_to_hbm [thread:$0]  %s465, 32, %s462, %s438
        $region36: #{tpu_custom_call.1} parent=31 // pred_fallthru
          _
        // Predicated region
        $region37: #{tpu_custom_call.1} parent=31 // pred_check
          %p468 = pneg %p159
        $region38: #{tpu_custom_call.1} parent=31 // pred_check_branch
          %470 = sbr.rel (%p468) target = $region40
        $region39: #{tpu_custom_call.1} parent=31 // pred_region
          %s471 = smul.u32 2, %s29
          %s473 = ssub.s32 32, 32
          %474 = vsyncadd %s443, %s473
          %s475 = smul.addr %s28, 2
          %s476 = sadd.s32 %s471, %s475
          %s477 = smul.addr %s476, 16
          %s478 = scalar_lea.hbm %s4, %s477
          %s480 = sshll.u32 %s446, 4
          %s481 = int_to_ptr.vmem [resolvable:$true] %s480
          %483 = dma.vmem_to_hbm [thread:$0]  %s481, 32, %s478, %s443
        $region40: #{tpu_custom_call.1} parent=31 // pred_fallthru
          _
        // Predicated region
        $region41: #{tpu_custom_call.1} parent=31 // pred_check
          %p484 = pneg %p187
        $region42: #{tpu_custom_call.1} parent=31 // pred_check_branch
          %486 = sbr.rel (%p484) target = $region44
        $region43: #{tpu_custom_call.1} parent=31 // pred_region
          %s487 = smul.u32 2, %s29
          %s489 = ssub.s32 32, 32
          %490 = vsyncadd %s448, %s489
          %s491 = smul.addr %s28, 2
          %s492 = sadd.s32 %s487, %s491
          %s493 = smul.addr %s492, 16
          %s494 = scalar_lea.hbm %s5, %s493
          %s496 = sshll.u32 %s451, 4
          %s497 = int_to_ptr.vmem [resolvable:$true] %s496
          %499 = dma.vmem_to_hbm [thread:$0]  %s497, 32, %s494, %s448
        $region44: #{tpu_custom_call.1} parent=31 // pred_fallthru
          _
      $region32: #{tpu_custom_call.1} parent=5 // pred_fallthru
        _
      %p500 = scmp.le.s32.totalorder 2, %s19
      // Predicated region
      $region45: #{tpu_custom_call.1} parent=5 // pred_check
        %p501 = pneg %p500
      $region46: #{tpu_custom_call.1} parent=5 // pred_check_branch
        %503 = sbr.rel (%p501) target = $region48
      $region47: #{tpu_custom_call.1} parent=5 // pred_region
        %s504 = ssub.s32 %s19, 2
        // Predicated region
        $region49: #{tpu_custom_call.1} parent=47 // pred_check
          %p505 = pneg %p137
        $region50: #{tpu_custom_call.1} parent=47 // pred_check_branch
          %507 = sbr.rel (%p505) target = $region52
        $region51: #{tpu_custom_call.1} parent=47 // pred_region
          %s508 = sand.u32 %s122, 1
          %s509 = scalar_lea.sflag [#allocation4], %s508
          %s510 = sand.u32 %s122, 1
          %s511 = smul.addr %s510, 2
          %s512 = scalar_lea.vmem [#allocation3], %s511
          %513 = dma.done %s509, 32
        $region52: #{tpu_custom_call.1} parent=47 // pred_fallthru
          _
        // Predicated region
        $region53: #{tpu_custom_call.1} parent=47 // pred_check
          %p514 = pneg %p165
        $region54: #{tpu_custom_call.1} parent=47 // pred_check_branch
          %516 = sbr.rel (%p514) target = $region56
        $region55: #{tpu_custom_call.1} parent=47 // pred_region
          %s517 = sand.u32 %s25, 1
          %s518 = scalar_lea.sflag [#allocation6], %s517
          %s519 = sand.u32 %s150, 1
          %s520 = smul.addr %s519, 2
          %s521 = scalar_lea.vmem [#allocation5], %s520
          %522 = dma.done %s518, 32
        $region56: #{tpu_custom_call.1} parent=47 // pred_fallthru
          _
        // Predicated region
        $region57: #{tpu_custom_call.1} parent=47 // pred_check
          %p523 = pneg %p193
        $region58: #{tpu_custom_call.1} parent=47 // pred_check_branch
          %525 = sbr.rel (%p523) target = $region60
        $region59: #{tpu_custom_call.1} parent=47 // pred_region
          %s526 = sand.u32 %s25, 1
          %s527 = scalar_lea.sflag [#allocation6], %s526
          %s528 = sand.u32 %s178, 1
          %s529 = smul.addr %s528, 2
          %s530 = scalar_lea.vmem [#allocation7], %s529
          %531 = dma.done %s527, 32
        $region60: #{tpu_custom_call.1} parent=47 // pred_fallthru
          _
      $region48: #{tpu_custom_call.1} parent=5 // pred_fallthru
        _
    $region6: #{tpu_custom_call.1} parent=1 // loop_footer
      %s23 = sadd.s32 1, %s19
    $region7: #{tpu_custom_call.1} parent=1 // loop_footer_branch
      %18 = sbr.rel target = $region3
    $region8: #{tpu_custom_call.1} parent=1 // loop_exit
      _
    %532 = vsyncpa [#allocation4], 1
    %s533 = scalar_lea.sflag [#allocation4], 1
    %534 = vsyncpa %s533, 1
    %535 = vsyncpa [#allocation6], 1
    %s536 = scalar_lea.sflag [#allocation6], 1
    %537 = vsyncpa %s536, 1

</llo_original>
